<compile_context>
chip_gen: v6e
topology: v6e:2x2x1
jax: 0.10.0
libtpu: 0.0.40
codegen_flags: <defaults>
</compile_context>

<pallas_src>
import jax
import jax.numpy as jnp
from jax import lax
from jax.experimental import pallas as pl
from jax.experimental.pallas import tpu as pltpu


LANES = 128            # vreg lane width (minor dim of the slab)
MAX_TILE_ROWS = 8192   # rows per grid step -> 4 MiB per f32 stream per buffer
MIN_SPLIT_ROWS = 512   # below this, skip the 2-way TensorCore split
NUM_CORE_SPLITS = 2    # leading "parallel" grid axis (v7x: one per TensorCore)


def _round_up(x, m):
    return ((x + m - 1) // m) * m


def _choose_tiling(rows, has_mask, num_splits):
    """Pick (tile_rows, ragged).

    Prefer a tile that divides the rows evenly across all splits so the
    non-ragged kernel variant (no per-step iota/compare/select) is compiled.
    """
    align = 32 if has_mask else 8          # 8-bit mask => (32,128) tiling unit
    if num_splits == 1 and rows <= MAX_TILE_ROWS:
        return rows, False                 # single full-extent block
    ideal = min(MAX_TILE_ROWS, pl.cdiv(rows, num_splits))
    start = max(align, (min(MAX_TILE_ROWS, rows // num_splits) // align) * align)
    # Don't trade >2x more grid steps just to avoid the ragged guard.
    min_accept = max(align, ideal // 2)
    for t in range(start, min_accept - 1, -align):
        if rows % (t * num_splits) == 0:
            return t, False
    return min(MAX_TILE_ROWS, _round_up(pl.cdiv(rows, num_splits), align)), True


def _make_masked_kernel(rows, tile_rows, tiles_per_split, acc_rows, ragged):
    """Accumulate per-core sum((p-t)^2 * m) and sum(m) partial slabs."""

    def kernel(p_ref, t_ref, m_ref, osum_ref, ocnt_ref, acc_s, acc_c):
        c = pl.program_id(0)
        i = pl.program_id(1)

        @pl.when(i == 0)
        def _init():
            acc_s[...] = jnp.zeros_like(acc_s)
            acc_c[...] = jnp.zeros_like(acc_c)

        d = p_ref[...].astype(jnp.float32) - t_ref[...].astype(jnp.float32)
        m = m_ref[...].astype(jnp.float32)
        sqm = (d * d) * m

        if ragged:
            # Rows past the logical end of the slab carry unspecified data
            # (could be NaN/Inf), so select -- don't multiply.  The limit is a
            # scalar (scalar-unit arithmetic), not a per-element vector add.
            limit = rows - (c * tiles_per_split + i) * tile_rows
            valid = lax.broadcasted_iota(jnp.int32, (tile_rows, LANES), 0) < limit
            sqm = jnp.where(valid, sqm, 0.0)
            m = jnp.where(valid, m, 0.0)

        # Per-(sublane, lane) partials: pure VPU adds each step, no XLU.
        acc_s[...] += jnp.sum(sqm.reshape(-1, acc_rows, LANES), axis=0)
        acc_c[...] += jnp.sum(m.reshape(-1, acc_rows, LANES), axis=0)

        @pl.when(i == pl.num_programs(1) - 1)
        def _finalize():
            osum_ref[...] = acc_s[...]
            ocnt_ref[...] = acc_c[...]

    return kernel


def _make_unmasked_kernel(rows, tile_rows, tiles_per_split, acc_rows, ragged):
    """Accumulate per-core sum((p-t)^2) partial slabs."""

    def kernel(p_ref, t_ref, osum_ref, acc_s):
        c = pl.program_id(0)
        i = pl.program_id(1)

        @pl.when(i == 0)
        def _init():
            acc_s[...] = jnp.zeros_like(acc_s)

        d = p_ref[...].astype(jnp.float32) - t_ref[...].astype(jnp.float32)
        sq = d * d

        if ragged:
            limit = rows - (c * tiles_per_split + i) * tile_rows
            valid = lax.broadcasted_iota(jnp.int32, (tile_rows, LANES), 0) < limit
            sq = jnp.where(valid, sq, 0.0)

        acc_s[...] += jnp.sum(sq.reshape(-1, acc_rows, LANES), axis=0)

        @pl.when(i == pl.num_programs(1) - 1)
        def _finalize():
            osum_ref[...] = acc_s[...]

    return kernel


def masked_mse(pred, target, mask=None):
    """Pallas TPU implementation of MaskedMSE.forward. Returns an f32 scalar."""
    pred = jnp.asarray(pred)
    target = jnp.asarray(target)
    assert pred.shape == target.shape
    n = pred.size
    assert n > 0

    if mask is not None:
        mask = jnp.asarray(mask)
        assert mask.shape == pred.shape
        # torch semantics are *boolean* indexing; an integer mask would
        # silently become a weighted MSE.
        assert mask.dtype == jnp.bool_, "MaskedMSE expects a boolean mask"

    pf = pred.reshape(-1)
    tf = target.reshape(-1)
    mf = None if mask is None else mask.reshape(-1)

    # Lane alignment.  Common case n % 128 == 0: free reshape, no copy.
    n_aligned = _round_up(n, LANES)
    if n_aligned != n:
        # TODO(synk): jnp.pad copies the whole flattened tensors in HBM just
        # to append <128 zeros; a manual-DMA tail path would avoid that copy.
        pad = n_aligned - n
        pf = jnp.pad(pf, (0, pad))
        tf = jnp.pad(tf, (0, pad))
        if mf is not None:
            mf = jnp.pad(mf, (0, pad))      # False => contributes nothing

    rows = n_aligned // LANES
    p2 = pf.reshape(rows, LANES)
    t2 = tf.reshape(rows, LANES)
    m2 = None if mf is None else mf.reshape(rows, LANES)

    num_splits = NUM_CORE_SPLITS if rows >= MIN_SPLIT_ROWS else 1
    tile_rows, ragged = _choose_tiling(rows, m2 is not None, num_splits)
    tiles_total = pl.cdiv(rows, tile_rows)
    tiles_per_split = pl.cdiv(tiles_total, num_splits)
    # Wider accumulator (up to 32 sublane-rows) -> independent VPU add chains.
    acc_rows = next((a for a in (32, 16, 8) if tile_rows % a == 0), tile_rows)

    if ragged:
        last_tile = tiles_total - 1

        def in_map(c, i):
            # Clamp tiles that fall entirely past the end back in bounds;
            # their rows are zeroed by the in-kernel validity mask.
            return (jnp.minimum(c * tiles_per_split + i, last_tile), 0)
    else:
        def in_map(c, i):
            return (c * tiles_per_split + i, 0)

    tile_spec = pl.BlockSpec((tile_rows, LANES), in_map)
    out_spec = pl.BlockSpec((acc_rows, LANES), lambda c, i: (c, 0))
    part_shape = jax.ShapeDtypeStruct((num_splits * acc_rows, LANES), jnp.float32)
    out_bytes = num_splits * acc_rows * LANES * 4

    # Explicit VMEM budget: double-buffered input streams + headroom.  Stays
    # well under v7x's 64 MiB physical VMEM even at 8192-row tiles.
    bytes_per_step = tile_rows * LANES * (
        p2.dtype.itemsize + t2.dtype.itemsize
        + (m2.dtype.itemsize if m2 is not None else 0))
    vmem_limit = int(min(2 * bytes_per_step + (8 << 20), 96 << 20))

    cparams = pltpu.CompilerParams(
        dimension_semantics=("parallel", "arbitrary"),
        vmem_limit_bytes=vmem_limit)

    in_bytes = p2.size * p2.dtype.itemsize + t2.size * t2.dtype.itemsize
    if m2 is not None:
        in_bytes += m2.size * m2.dtype.itemsize

    if m2 is None:
        kernel = _make_unmasked_kernel(rows, tile_rows, tiles_per_split,
                                       acc_rows, ragged)
        out_s = pl.pallas_call(
            kernel,
            out_shape=part_shape,
            grid_spec=pltpu.PrefetchScalarGridSpec(
                num_scalar_prefetch=0,
                grid=(num_splits, tiles_per_split),
                in_specs=[tile_spec, tile_spec],
                out_specs=out_spec,
                scratch_shapes=[pltpu.VMEM((acc_rows, LANES), jnp.float32)],
            ),
            compiler_params=cparams,
            cost_estimate=pl.CostEstimate(
                flops=3 * n, transcendentals=0,
                bytes_accessed=in_bytes + out_bytes),
        )(p2, t2)
        # Tiny epilogue: reduce the per-core partial slab and divide by the
        # static element count.
        return jnp.sum(out_s) / n
    else:
        kernel = _make_masked_kernel(rows, tile_rows, tiles_per_split,
                                     acc_rows, ragged)
        out_s, out_c = pl.pallas_call(
            kernel,
            out_shape=(part_shape, part_shape),
            grid_spec=pltpu.PrefetchScalarGridSpec(
                num_scalar_prefetch=0,
                grid=(num_splits, tiles_per_split),
                in_specs=[tile_spec, tile_spec, tile_spec],
                out_specs=(out_spec, out_spec),
                scratch_shapes=[pltpu.VMEM((acc_rows, LANES), jnp.float32),
                                pltpu.VMEM((acc_rows, LANES), jnp.float32)],
            ),
            compiler_params=cparams,
            cost_estimate=pl.CostEstimate(
                flops=5 * n, transcendentals=0,
                bytes_accessed=in_bytes + 2 * out_bytes),
        )(p2, t2, m2)
        # NOTE: per-slot f32 counts are exact integers; the final cross-slot
        # sum can round only above ~2^24 masked elements (~1e-7 rel. drift).
        # NaN if the mask is all-False (0/0) -- torch parity.
        return jnp.sum(out_s) / jnp.sum(out_c)


if __name__ == "__main__":
    key = jax.random.PRNGKey(0)
    k1, k2, k3 = jax.random.split(key, 3)

    # Small NCHW tensor (2048 elements, lane-aligned, single-tile path).
    shape = (2, 4, 16, 16)
    pred = jax.random.normal(k1, shape, dtype=jnp.float32)
    target = jax.random.normal(k2, shape, dtype=jnp.float32)
    mask = jax.random.bernoulli(k3, p=0.5, shape=shape)     # boolean mask

    # Masked case.
    out_masked = jax.block_until_ready(masked_mse(pred, target, mask))
    mf32 = mask.astype(jnp.float32)
    ref_masked = jnp.sum((pred - target) ** 2 * mf32) / jnp.sum(mf32)
    assert jnp.allclose(out_masked, ref_masked, rtol=1e-5, atol=1e-6)

    # mask=None case (plain MSE over all elements).
    out_none = jax.block_until_ready(masked_mse(pred, target, None))
    ref_none = jnp.mean((pred - target) ** 2)
    assert jnp.allclose(out_none, ref_none, rtol=1e-5, atol=1e-6)

    # Medium case exercising the 2-way TensorCore-split grid (1024 rows).
    shape2 = (4, 8, 64, 64)
    k4, k5, k6 = jax.random.split(k3, 3)
    pred2 = jax.random.normal(k4, shape2, dtype=jnp.float32)
    target2 = jax.random.normal(k5, shape2, dtype=jnp.float32)
    mask2 = jax.random.bernoulli(k6, p=0.3, shape=shape2)
    out2 = jax.block_until_ready(masked_mse(pred2, target2, mask2))
    m2f = mask2.astype(jnp.float32)
    ref2 = jnp.sum((pred2 - target2) ** 2 * m2f) / jnp.sum(m2f)
    assert jnp.allclose(out2, ref2, rtol=1e-5, atol=1e-6)

    # Unaligned + ragged-tile path (n % 128 != 0, no exact tile divisor).
    shape3 = (517, 129)
    k7, k8, k9 = jax.random.split(k6, 3)
    pred3 = jax.random.normal(k7, shape3, dtype=jnp.float32)
    target3 = jax.random.normal(k8, shape3, dtype=jnp.float32)
    mask3 = jax.random.bernoulli(k9, p=0.5, shape=shape3)
    out3 = jax.block_until_ready(masked_mse(pred3, target3, mask3))
    m3f = mask3.astype(jnp.float32)
    ref3 = jnp.sum((pred3 - target3) ** 2 * m3f) / jnp.sum(m3f)
    assert jnp.allclose(out3, ref3, rtol=1e-5, atol=1e-6)
    out3u = jax.block_until_ready(masked_mse(pred3, target3, None))
    ref3u = jnp.mean((pred3 - target3) ** 2)
    assert jnp.allclose(out3u, ref3u, rtol=1e-5, atol=1e-6)

    print("KERNEL_OK")
</pallas_src>

<mosaic_0001>
module attributes {stable_mosaic.version = 11 : i64} {
  func.func @kernel(%arg0: i32, %arg1: i32, %arg2: memref<16x128xf32, #tpu.memory_space<vmem>>, %arg3: memref<16x128xf32, #tpu.memory_space<vmem>>, %arg4: memref<16x128xi32, #tpu.memory_space<vmem>>, %arg5: memref<16x128xf32, #tpu.memory_space<vmem>>, %arg6: memref<16x128xf32, #tpu.memory_space<vmem>>, %arg7: memref<16x128xf32, #tpu.memory_space<vmem>>, %arg8: memref<16x128xf32, #tpu.memory_space<vmem>>) attributes {dimension_semantics = [#tpu.dimension_semantics<parallel>, #tpu.dimension_semantics<arbitrary>], iteration_bounds = array<i64: 1, 1>, scalar_prefetch = 0 : i64, scratch_operands = 2 : i64, tpu.core_type = #tpu.core_type<tc>, window_params = [{transform_indices = @transform_0, window_bounds = array<i64: 16, 128>}, {transform_indices = @transform_1, window_bounds = array<i64: 16, 128>}, {transform_indices = @transform_2, window_bounds = array<i64: 16, 128>}, {transform_indices = @transform_3, window_bounds = array<i64: 16, 128>}, {transform_indices = @transform_4, window_bounds = array<i64: 16, 128>}]} {
    %c0_i32 = arith.constant 0 : i32
    %0 = arith.cmpi eq, %arg1, %c0_i32 : i32
    %1 = arith.extui %0 : i1 to i32
    %c0_i32_0 = arith.constant 0 : i32
    %2 = arith.cmpi ne, %1, %c0_i32_0 : i32
    scf.if %2 {
      %cst_18 = arith.constant 0.000000e+00 : f32
      %25 = vector.broadcast %cst_18 : f32 to vector<16x128xf32>
      %c0_19 = arith.constant 0 : index
      %c0_20 = arith.constant 0 : index
      %26 = vector.load %arg7[%c0_19, %c0_20] : memref<16x128xf32, #tpu.memory_space<vmem>>, vector<16x128xf32>
      tpu.vector_store %arg7[%c0_19, %c0_20], %25 {strides = array<i32>} : memref<16x128xf32, #tpu.memory_space<vmem>>, vector<16x128xf32>,
      %cst_21 = arith.constant 0.000000e+00 : f32
      %27 = vector.broadcast %cst_21 : f32 to vector<16x128xf32>
      %c0_22 = arith.constant 0 : index
      %c0_23 = arith.constant 0 : index
      %28 = vector.load %arg8[%c0_22, %c0_23] : memref<16x128xf32, #tpu.memory_space<vmem>>, vector<16x128xf32>
      tpu.vector_store %arg8[%c0_22, %c0_23], %27 {strides = array<i32>} : memref<16x128xf32, #tpu.memory_space<vmem>>, vector<16x128xf32>,
    } else {
    }
    %c0 = arith.constant 0 : index
    %c0_1 = arith.constant 0 : index
    %3 = vector.load %arg2[%c0, %c0_1] : memref<16x128xf32, #tpu.memory_space<vmem>>, vector<16x128xf32>
    %c0_2 = arith.constant 0 : index
    %c0_3 = arith.constant 0 : index
    %4 = vector.load %arg3[%c0_2, %c0_3] : memref<16x128xf32, #tpu.memory_space<vmem>>, vector<16x128xf32>
    %5 = arith.subf %3, %4 : vector<16x128xf32>
    %c0_4 = arith.constant 0 : index
    %c0_5 = arith.constant 0 : index
    %6 = vector.load %arg4[%c0_4, %c0_5] : memref<16x128xi32, #tpu.memory_space<vmem>>, vector<16x128xi32>
    %cst = arith.constant dense<0> : vector<16x128xi32>
    %7 = arith.cmpi ne, %6, %cst : vector<16x128xi32>
    %8 = arith.extui %7 : vector<16x128xi1> to vector<16x128xi32>
    %9 = arith.sitofp %8 : vector<16x128xi32> to vector<16x128xf32>
    %10 = arith.mulf %5, %5 : vector<16x128xf32>
    %11 = arith.mulf %10, %9 : vector<16x128xf32>
    %c0_6 = arith.constant 0 : index
    %c0_7 = arith.constant 0 : index
    %12 = vector.load %arg7[%c0_6, %c0_7] : memref<16x128xf32, #tpu.memory_space<vmem>>, vector<16x128xf32>
    %13 = vector.shape_cast %11 : vector<16x128xf32> to vector<1x16x128xf32>
    %cst_8 = arith.constant dense<0.000000e+00> : vector<16x128xf32>
    %14 = vector.multi_reduction <add>, %13, %cst_8 [0] : vector<1x16x128xf32> to vector<16x128xf32>
    %15 = arith.addf %12, %14 : vector<16x128xf32>
    %c0_9 = arith.constant 0 : index
    %c0_10 = arith.constant 0 : index
    %16 = vector.load %arg7[%c0_9, %c0_10] : memref<16x128xf32, #tpu.memory_space<vmem>>, vector<16x128xf32>
    tpu.vector_store %arg7[%c0_9, %c0_10], %15 {strides = array<i32>} : memref<16x128xf32, #tpu.memory_space<vmem>>, vector<16x128xf32>,
    %c0_11 = arith.constant 0 : index
    %c0_12 = arith.constant 0 : index
    %17 = vector.load %arg8[%c0_11, %c0_12] : memref<16x128xf32, #tpu.memory_space<vmem>>, vector<16x128xf32>
    %18 = vector.shape_cast %9 : vector<16x128xf32> to vector<1x16x128xf32>
    %cst_13 = arith.constant dense<0.000000e+00> : vector<16x128xf32>
    %19 = vector.multi_reduction <add>, %18, %cst_13 [0] : vector<1x16x128xf32> to vector<16x128xf32>
    %20 = arith.addf %17, %19 : vector<16x128xf32>
    %c0_14 = arith.constant 0 : index
    %c0_15 = arith.constant 0 : index
    %21 = vector.load %arg8[%c0_14, %c0_15] : memref<16x128xf32, #tpu.memory_space<vmem>>, vector<16x128xf32>
    tpu.vector_store %arg8[%c0_14, %c0_15], %20 {strides = array<i32>} : memref<16x128xf32, #tpu.memory_space<vmem>>, vector<16x128xf32>,
    %c0_i32_16 = arith.constant 0 : i32
    %22 = arith.cmpi eq, %arg1, %c0_i32_16 : i32
    %23 = arith.extui %22 : i1 to i32
    %c0_i32_17 = arith.constant 0 : i32
    %24 = arith.cmpi ne, %23, %c0_i32_17 : i32
    scf.if %24 {
      %c0_18 = arith.constant 0 : index
      %c0_19 = arith.constant 0 : index
      %25 = vector.load %arg7[%c0_18, %c0_19] : memref<16x128xf32, #tpu.memory_space<vmem>>, vector<16x128xf32>
      %c0_20 = arith.constant 0 : index
      %c0_21 = arith.constant 0 : index
      %26 = vector.load %arg5[%c0_20, %c0_21] : memref<16x128xf32, #tpu.memory_space<vmem>>, vector<16x128xf32>
      tpu.vector_store %arg5[%c0_20, %c0_21], %25 {strides = array<i32>} : memref<16x128xf32, #tpu.memory_space<vmem>>, vector<16x128xf32>,
      %c0_22 = arith.constant 0 : index
      %c0_23 = arith.constant 0 : index
      %27 = vector.load %arg8[%c0_22, %c0_23] : memref<16x128xf32, #tpu.memory_space<vmem>>, vector<16x128xf32>
      %c0_24 = arith.constant 0 : index
      %c0_25 = arith.constant 0 : index
      %28 = vector.load %arg6[%c0_24, %c0_25] : memref<16x128xf32, #tpu.memory_space<vmem>>, vector<16x128xf32>
      tpu.vector_store %arg6[%c0_24, %c0_25], %27 {strides = array<i32>} : memref<16x128xf32, #tpu.memory_space<vmem>>, vector<16x128xf32>,
    } else {
    }
    return
  }
  func.func @transform_0(%arg0: i32, %arg1: i32) -> (i32, i32) {
    %c1_i32 = arith.constant 1 : i32
    %0 = arith.muli %arg0, %c1_i32 : i32
    %1 = arith.addi %0, %arg1 : i32
    %c0_i32 = arith.constant 0 : i32
    %c0_i32_0 = arith.constant 0 : i32
    return %1, %c0_i32 : i32, i32
  }
  func.func @transform_1(%arg0: i32, %arg1: i32) -> (i32, i32) {
    %c1_i32 = arith.constant 1 : i32
    %0 = arith.muli %arg0, %c1_i32 : i32
    %1 = arith.addi %0, %arg1 : i32
    %c0_i32 = arith.constant 0 : i32
    %c0_i32_0 = arith.constant 0 : i32
    return %1, %c0_i32 : i32, i32
  }
  func.func @transform_2(%arg0: i32, %arg1: i32) -> (i32, i32) {
    %c1_i32 = arith.constant 1 : i32
    %0 = arith.muli %arg0, %c1_i32 : i32
    %1 = arith.addi %0, %arg1 : i32
    %c0_i32 = arith.constant 0 : i32
    %c0_i32_0 = arith.constant 0 : i32
    return %1, %c0_i32 : i32, i32
  }
  func.func @transform_3(%arg0: i32, %arg1: i32) -> (i32, i32) {
    %c0_i32 = arith.constant 0 : i32
    %c0_i32_0 = arith.constant 0 : i32
    return %arg0, %c0_i32 : i32, i32
  }
  func.func @transform_4(%arg0: i32, %arg1: i32) -> (i32, i32) {
    %c0_i32 = arith.constant 0 : i32
    %c0_i32_0 = arith.constant 0 : i32
    return %arg0, %c0_i32 : i32, i32
  }
}

</mosaic_0001>

<llo_original>
// kernel: tpu_custom_call.1
$region0: #{tpu_custom_call.1}
  #allocation0 [shape = 'u32[]', space=smem, size = 0x4, offset = 0x4, fixed_abs, tag = 'smem constant byte address 0x4 - core index']
  #allocation1 [shape = 'u32[144,128]{1,0:T(1,128)}', space=vmem, size = 0x12000, scoped, tag = 'internal scratch']
  #allocation2 [shape = 'f32[16,128]{1,0:T(8,128)}', space=vmem, size = 0x2000, scoped, tag = 'scratch operand']
  #allocation3 [shape = 'f32[16,128]{1,0:T(8,128)}', space=vmem, size = 0x2000, scoped, tag = 'scratch operand']
  %s0 = inlined_call_operand.vmem [shape: f32[16,128], index: 0, kind: input, shape index: {}]
  %s1 = inlined_call_operand.hbm [shape: f32[16,128], index: 1, kind: input, shape index: {}]
  %s2 = inlined_call_operand.vmem [shape: s32[16,128], index: 2, kind: input, shape index: {}]
  %s3 = inlined_call_operand.hbm [shape: f32[16,128], index: 3, kind: output, shape index: {0}]
  %s4 = inlined_call_operand.hbm [shape: f32[16,128], index: 4, kind: output, shape index: {1}]
  %5 = xla_tuple %s3, %s4
  %s6 = sld [smem:[#allocation0]]
  $region42: #{tpu_custom_call.1} parent=0
    _
  %s8 = ssub.s32 1, %s6
  %s9 = scalar_select 0, %s8, %s6
  $region1: #{tpu_custom_call.1} parent=0
    #allocation4 [shape = 'u8[8192]{0}', space=vmem, size = 0x2000, scoped, tag = 'input window, operand 1, single buffered']
    #allocation5 [shape = 's32[1]{0}', space=sflag, size = 0x4, scoped, tag = 'scoped memory for tpu_custom_call.1']
    #allocation6 [shape = 's32[1]{0}', space=sflag, size = 0x4, scoped, tag = 'scoped memory for tpu_custom_call.1']
    #allocation7 [shape = 'u8[8192]{0}', space=vmem, size = 0x2000, scoped, tag = 'output window, operand 0, single buffered']
    #allocation8 [shape = 'u8[8192]{0}', space=vmem, size = 0x2000, scoped, tag = 'output window, operand 1, single buffered']
    #allocation9 [shape = 's32[1]{0}', space=sflag, size = 0x4, scoped, tag = 'scoped memory for tpu_custom_call.1']
    %10 = vsyncpa [#allocation5], 0
    %11 = vsyncpa [#allocation6], 0
    %12 = vsyncpa [#allocation9], 0
    // Predicated region
    $region2: #{tpu_custom_call.1} parent=1 // pred_check
      _
    $region3: #{tpu_custom_call.1} parent=1 // pred_check_branch
      %14 = sbr.rel (0) target = $region5
    $region4: #{tpu_custom_call.1} parent=1 // pred_region
      %s15 = sadd.s32 0, 0
      %s16 = smul.u32 2, %s15
      %p17 = scmp.lt.s32.totalorder %s16, 1
      %s18 = scalar_select %p17, %s16, 1
      %s19 = smul.addr %s18, 8
      %s20 = scalar_lea.vmem %s0, %s19
      %s21 = sadd.s32 0, 0
      %s22 = smul.u32 2, %s21
    $region5: #{tpu_custom_call.1} parent=1 // pred_fallthru
      _
    // Predicated region
    $region6: #{tpu_custom_call.1} parent=1 // pred_check
      _
    $region7: #{tpu_custom_call.1} parent=1 // pred_check_branch
      %24 = sbr.rel (0) target = $region9
    $region8: #{tpu_custom_call.1} parent=1 // pred_region
      %s25 = sadd.s32 0, 0
      %s26 = smul.u32 2, %s25
      %s28 = ssub.s32 256, 256
      %29 = vsyncadd [#allocation5], %s28
      %s30 = smul.addr %s26, 128
      %s31 = scalar_lea.hbm %s1, %s30
      %s32 = sshll.u32 [#allocation4], 4
      %s33 = int_to_ptr.vmem [resolvable:$true] %s32
      %38 = dma.hbm_to_vmem [thread:$0]  %s31, 256, %s33, [#allocation5], 128, 128, 8
    $region9: #{tpu_custom_call.1} parent=1 // pred_fallthru
      _
    // Predicated region
    $region10: #{tpu_custom_call.1} parent=1 // pred_check
      _
    $region11: #{tpu_custom_call.1} parent=1 // pred_check_branch
      %40 = sbr.rel (0) target = $region13
    $region12: #{tpu_custom_call.1} parent=1 // pred_region
      %s41 = sadd.s32 0, 0
      %s42 = smul.u32 2, %s41
      %p43 = scmp.lt.s32.totalorder %s42, 1
      %s44 = scalar_select %p43, %s42, 1
      %s45 = smul.addr %s44, 8
      %s46 = scalar_lea.vmem %s2, %s45
      %s47 = sadd.s32 0, 0
      %s48 = smul.u32 2, %s47
    $region13: #{tpu_custom_call.1} parent=1 // pred_fallthru
      _
    // Predicated region
    $region14: #{tpu_custom_call.1} parent=1 // pred_check
      _
    $region15: #{tpu_custom_call.1} parent=1 // pred_check_branch
      %50 = sbr.rel (0) target = $region17
    $region16: #{tpu_custom_call.1} parent=1 // pred_region
      %51 = dma.done [#allocation5], 256
    $region17: #{tpu_custom_call.1} parent=1 // pred_fallthru
      _
    %s52 = sadd.s32 0, 0
    %s53 = smul.u32 2, %s52
    %p54 = scmp.lt.s32.totalorder %s53, 1
    %s55 = scalar_select %p54, %s53, 1
    %s56 = smul.addr %s55, 8
    %s57 = scalar_lea.vmem %s0, %s56
    %s58 = sadd.s32 0, 0
    %s59 = smul.u32 2, %s58
    %p60 = scmp.lt.s32.totalorder %s59, 1
    %s61 = scalar_select %p60, %s59, 1
    %s62 = smul.addr %s61, 8
    %s63 = scalar_lea.vmem %s2, %s62
    %s64 = sadd.s32 0, 0
    %s65 = smul.u32 2, %s64
    %p66 = scmp.lt.s32.totalorder %s65, 1
    %s67 = scalar_select %p66, %s65, 1
    %s68 = smul.addr %s67, 8
    %s69 = scalar_lea.vmem %s0, %s68
    %s70 = sadd.s32 0, 0
    %s71 = smul.u32 2, %s70
    %s72 = sadd.s32 0, 0
    %s73 = smul.u32 2, %s72
    %s74 = sadd.s32 0, 0
    %s75 = smul.u32 2, %s74
    %p76 = scmp.lt.s32.totalorder %s75, 1
    %s77 = scalar_select %p76, %s75, 1
    %s78 = smul.addr %s77, 8
    %s79 = scalar_lea.vmem %s2, %s78
    %s80 = sadd.s32 0, 0
    %s81 = smul.u32 2, %s80
    %p82 = scmp.eq.s32.totalorder 0, 0
    // Predicated region
    $region18: #{tpu_custom_call.1} parent=1 // pred_check
      %p83 = pneg %p82
    $region19: #{tpu_custom_call.1} parent=1 // pred_check_branch
      %85 = sbr.rel (%p83) target = $region21
    $region20: #{tpu_custom_call.1} parent=1 // pred_region
      %86 = vst [vmem:[#allocation2] sm:$0xff] 0.0
      %87 = vst [vmem:[#allocation2 + $0x8] sm:$0xff] 0.0
      %88 = vst [vmem:[#allocation3] sm:$0xff] 0.0
      %89 = vst [vmem:[#allocation3 + $0x8] sm:$0xff] 0.0
    $region21: #{tpu_custom_call.1} parent=1 // pred_fallthru
      _
    %v90 = vld [vmem:[%s69] sm:$0xff]
    %v91 = vld [vmem:[%s69 + $0x8] sm:$0xff]
    %v92 = vld [vmem:[#allocation4] sm:$0xff]
    %v93 = vld [vmem:[#allocation4 + $0x8] sm:$0xff]
    %v94 = vsub.f32 %v90, %v92
    %v95 = vsub.f32 %v91, %v93
    %v96 = vld [vmem:[%s79] sm:$0xff]
    %v97 = vld [vmem:[%s79 + $0x8] sm:$0xff]
    %vm98 = vcmp.ne.s32.totalorder %v96, 0
    %vm99 = vcmp.ne.s32.totalorder %v97, 0
    %v100 = vsel %vm98, 1, 0
    %v101 = vsel %vm99, 1, 0
    %v102 = vcvt.s32.f32 %v100
    %v103 = vcvt.s32.f32 %v101
    %v104 = vmul.f32 %v94, %v94
    %v105 = vmul.f32 %v95, %v95
    %v106 = vmul.f32 %v104, %v102
    %v107 = vmul.f32 %v105, %v103
    %v108 = vld [vmem:[#allocation2] sm:$0xff]
    %v109 = vld [vmem:[#allocation2 + $0x8] sm:$0xff]
    %v110 = vadd.f32 %v106, 0.0
    %v111 = vadd.f32 %v107, 0.0
    %v112 = vadd.f32 %v108, %v110
    %v113 = vadd.f32 %v109, %v111
    %114 = vst [vmem:[#allocation2] sm:$0xff] %v112
    %115 = vst [vmem:[#allocation2 + $0x8] sm:$0xff] %v113
    %v116 = vld [vmem:[#allocation3] sm:$0xff]
    %v117 = vld [vmem:[#allocation3 + $0x8] sm:$0xff]
    %v118 = vadd.f32 %v102, 0.0
    %v119 = vadd.f32 %v103, 0.0
    %v120 = vadd.f32 %v116, %v118
    %v121 = vadd.f32 %v117, %v119
    %122 = vst [vmem:[#allocation3] sm:$0xff] %v120
    %123 = vst [vmem:[#allocation3 + $0x8] sm:$0xff] %v121
    // Predicated region
    $region22: #{tpu_custom_call.1} parent=1 // pred_check
      %p124 = pneg %p82
    $region23: #{tpu_custom_call.1} parent=1 // pred_check_branch
      %126 = sbr.rel (%p124) target = $region25
    $region24: #{tpu_custom_call.1} parent=1 // pred_region
      %v127 = vld [vmem:[#allocation2] sm:$0xff]
      %v128 = vld [vmem:[#allocation2 + $0x8] sm:$0xff]
      %129 = vst [vmem:[#allocation7] sm:$0xff] %v127
      %130 = vst [vmem:[#allocation7 + $0x8] sm:$0xff] %v128
      %v131 = vld [vmem:[#allocation3] sm:$0xff]
      %v132 = vld [vmem:[#allocation3 + $0x8] sm:$0xff]
      %133 = vst [vmem:[#allocation8] sm:$0xff] %v131
      %134 = vst [vmem:[#allocation8 + $0x8] sm:$0xff] %v132
    $region25: #{tpu_custom_call.1} parent=1 // pred_fallthru
      _
    // Predicated region
    $region26: #{tpu_custom_call.1} parent=1 // pred_check
      _
    $region27: #{tpu_custom_call.1} parent=1 // pred_check_branch
      %136 = sbr.rel (0) target = $region29
    $region28: #{tpu_custom_call.1} parent=1 // pred_region
      %s138 = ssub.s32 256, 256
      %139 = vsyncadd [#allocation6], %s138
      %s140 = sshll.u32 [#allocation7], 4
      %s141 = int_to_ptr.vmem [resolvable:$true] %s140
      %146 = dma.vmem_to_hbm [thread:$0]  %s141, 256, %s3, [#allocation6], 128, 128, 8
    $region29: #{tpu_custom_call.1} parent=1 // pred_fallthru
      _
    // Predicated region
    $region30: #{tpu_custom_call.1} parent=1 // pred_check
      _
    $region31: #{tpu_custom_call.1} parent=1 // pred_check_branch
      %148 = sbr.rel (0) target = $region33
    $region32: #{tpu_custom_call.1} parent=1 // pred_region
      %s150 = ssub.s32 256, 256
      %151 = vsyncadd [#allocation9], %s150
      %s152 = sshll.u32 [#allocation8], 4
      %s153 = int_to_ptr.vmem [resolvable:$true] %s152
      %158 = dma.vmem_to_hbm [thread:$0]  %s153, 256, %s4, [#allocation9], 128, 128, 8
    $region33: #{tpu_custom_call.1} parent=1 // pred_fallthru
      _
    // Predicated region
    $region34: #{tpu_custom_call.1} parent=1 // pred_check
      _
    $region35: #{tpu_custom_call.1} parent=1 // pred_check_branch
      %160 = sbr.rel (0) target = $region37
    $region36: #{tpu_custom_call.1} parent=1 // pred_region
      %161 = dma.done [#allocation6], 256
    $region37: #{tpu_custom_call.1} parent=1 // pred_fallthru
      _
    // Predicated region
    $region38: #{tpu_custom_call.1} parent=1 // pred_check
      _
    $region39: #{tpu_custom_call.1} parent=1 // pred_check_branch
      %163 = sbr.rel (0) target = $region41
    $region40: #{tpu_custom_call.1} parent=1 // pred_region
      %164 = dma.done [#allocation9], 256
    $region41: #{tpu_custom_call.1} parent=1 // pred_fallthru
      _
    %165 = vsyncpa [#allocation5], 1
    %166 = vsyncpa [#allocation6], 1
    %167 = vsyncpa [#allocation9], 1

</llo_original>
